<compile_context>
chip_gen: v7x
topology: tpu7x:2x2x1
jax: 0.10.0
libtpu: 0.0.40
codegen_flags: <defaults>
</compile_context>

<pallas_src>
import functools

import jax
import jax.numpy as jnp
from jax.experimental import pallas as pl
from jax.experimental.pallas import tpu as pltpu


# --------------------------------------------------------------------------
# Init-time helpers (plain JAX glue, run once).
# --------------------------------------------------------------------------
def quantize_sym_int8(w, dim=-1, clip_ratio=1.0, bits=8):
    """Matches torch quantize(..., sym=True) semantics for int8."""
    max_q = 2 ** (bits - 1) - 1            # 127
    min_q = -(max_q + 1)                   # -128
    mag = jnp.max(jnp.abs(w), axis=dim, keepdims=True) * clip_ratio
    scale = jnp.where(mag == 0, jnp.ones_like(mag), mag / max_q)
    q = jnp.round(jnp.clip(w / scale, min_q, max_q)).astype(jnp.int8)
    return q, scale


def _round_up(x, m):
    return (x + m - 1) // m * m


def _device_kind():
    try:
        return jax.devices()[0].device_kind.lower()
    except Exception:
        return ""


def _default_use_int8_mxu():
    # v5e/v5p/v6e MXUs have a native int8 path; v7x (and unknown chips) -> bf16.
    kind = _device_kind()
    return ("v5" in kind) or ("v6" in kind)


def _vmem_limit_bytes():
    kind = _device_kind()
    if "v7" in kind:
        return 48 * 1024 * 1024          # 64 MiB physical VMEM per TC on v7x
    if ("v5" in kind) or ("v6" in kind):
        return 64 * 1024 * 1024          # 128 MiB physical VMEM
    return None                          # unknown chip: keep compiler default


def _pick_tm(M):
    """Largest useful row tile, balancing M-padding waste vs weight re-streaming."""
    kind = _device_kind()
    max_tm = 512 if ("v6" in kind and M > 256) else 256
    candidates = [t for t in (32, 64, 128, 256, 512) if t <= max_tm]

    def cost(t):
        m_pad = _round_up(M, t)
        # dead matmul rows + ~rows-equivalent cost per extra weight stream
        return m_pad + (m_pad // t) * 256

    return min(candidates, key=lambda t: (cost(t), -t))


def prepare_qlinear_weights(w_q, w_scale_f16, *, tn=256, tk=512):
    """One-time weight re-layout (call at module init and cache the result).

    w_q         : (out_features, in_features) int8 quantized weight (torch layout)
    w_scale_f16 : (out_features, 1) float16 per-output-channel scale

    Returns a dict with:
      w_tiles : (N_pad//tn, K_pad, tn) int8  -- each matmul tile is HBM-contiguous
      w_scale : (1, N_pad) float32           -- lane-dense
    """
    N, K = w_q.shape
    tk = min(tk, _round_up(K, 128))
    K_pad = _round_up(K, tk)
    tn = min(tn, _round_up(N, 128))
    N_pad = _round_up(N, tn)

    w_t = jnp.pad(w_q.T.astype(jnp.int8), ((0, K_pad - K), (0, N_pad - N)))
    # (K_pad, N_pad) -> (N_pad//tn, K_pad, tn): tile-contiguous weight stream.
    w_tiles = jnp.asarray(w_t.reshape(K_pad, N_pad // tn, tn).transpose(1, 0, 2))
    ws = jnp.pad(w_scale_f16.astype(jnp.float32).reshape(1, N),
                 ((0, 0), (0, N_pad - N)), constant_values=1.0)
    return {"w_tiles": w_tiles, "w_scale": ws,
            "n": N, "k": K, "n_pad": N_pad, "k_pad": K_pad, "tn": tn, "tk": tk}


# --------------------------------------------------------------------------
# Kernel 1: memory-bound prologue -- dynamic per-row int8 activation quantization.
#   x_ref  : (tm_q, K_pad) activations (f32 or bf16)
#   aq_ref : (tm_q, K_pad) int8 quantized activations
#   as_ref : (tm_q, 1)     f32 per-row activation scale
# --------------------------------------------------------------------------
def _act_quant_kernel(x_ref, aq_ref, as_ref, *, clip_ratio):
    x = x_ref[...].astype(jnp.float32)
    mag = jnp.max(jnp.abs(x), axis=-1, keepdims=True) * clip_ratio       # (tm, 1)
    is_zero = mag == 0.0
    as_ref[...] = jnp.where(is_zero, 1.0, mag * (1.0 / 127.0))           # scale
    inv = jnp.where(is_zero, 1.0, 127.0 / mag)                           # 1/scale
    aq_ref[...] = jnp.round(jnp.clip(x * inv, -128.0, 127.0)).astype(jnp.int8)


# --------------------------------------------------------------------------
# Kernel 2: K-tiled low-precision matmul + dequantization.
#   aq_ref : (tm, tk)   int8 quantized activation tile
#   w_ref  : (tk, tn)   int8 weight tile (leading tile index squeezed)
#   as_ref : (tm, 1)    f32 per-row activation scale
#   ws_ref : (1, tn)    f32 per-output-channel weight scale
#   o_ref  : (tm, tn)   output tile
#   acc_ref: (tm, tn)   accumulator scratch (int32 for int8 MXU, f32 for bf16)
# --------------------------------------------------------------------------
def _qmatmul_kernel(aq_ref, w_ref, as_ref, ws_ref, o_ref, acc_ref, *, use_int8_mxu):
    @pl.when(pl.program_id(2) == 0)
    def _():
        acc_ref[...] = jnp.zeros_like(acc_ref)

    if use_int8_mxu:
        # Native int8 MXU path (v5e / v6e): exact int32 accumulation.
        acc_ref[...] += jax.lax.dot_general(
            aq_ref[...], w_ref[...],
            dimension_numbers=(((1,), (0,)), ((), ())),
            preferred_element_type=jnp.int32,
        )
    else:
        # bf16 operand path (v7x / fallback): integer values <= 127 are exact in
        # bf16; f32 accumulation (exact up to partial sums of 2^24).
        acc_ref[...] += jax.lax.dot_general(
            aq_ref[...].astype(jnp.bfloat16), w_ref[...].astype(jnp.bfloat16),
            dimension_numbers=(((1,), (0,)), ((), ())),
            preferred_element_type=jnp.float32,
        )

    @pl.when(pl.program_id(2) == pl.num_programs(2) - 1)
    def _():
        o_ref[...] = (acc_ref[...].astype(jnp.float32)
                      * as_ref[...] * ws_ref[...]).astype(o_ref.dtype)


# --------------------------------------------------------------------------
# Forward wrapper (consumes the pre-laid-out weight from prepare_qlinear_weights).
# --------------------------------------------------------------------------
def quantized_linear(x, prep, *, clip_ratio=1.0, out_dtype=None, use_int8_mxu=None):
    """Forward of the quantized Linear module (bits=8, int8, no bias).

    x    : (..., in_features) activations (f32 or bf16)
    prep : output of prepare_qlinear_weights()
    """
    *lead, K = x.shape
    assert K == prep["k"], "weight / activation in_features mismatch"
    N, N_pad, K_pad = prep["n"], prep["n_pad"], prep["k_pad"]
    tn, tk = prep["tn"], prep["tk"]

    if use_int8_mxu is None:
        use_int8_mxu = _default_use_int8_mxu()
    if out_dtype is None:
        out_dtype = x.dtype

    x2 = x.reshape(-1, K)
    M = x2.shape[0]
    tm = _pick_tm(M)
    M_pad = _round_up(M, tm)
    if M_pad != M or K_pad != K:
        x2 = jnp.pad(x2, ((0, M_pad - M), (0, K_pad - K)))   # zero rows/cols -> 0

    vmem_limit = _vmem_limit_bytes()

    # ---- prologue: fused abs-max / round / scale pass over the activations ----
    tm_q = tm
    while tm_q > 32 and tm_q * K_pad * 10 > 12 * 1024 * 1024:
        tm_q //= 2                         # keep prologue blocks well within VMEM
    aq, a_scale = pl.pallas_call(
        functools.partial(_act_quant_kernel, clip_ratio=clip_ratio),
        out_shape=(jax.ShapeDtypeStruct((M_pad, K_pad), jnp.int8),
                   jax.ShapeDtypeStruct((M_pad, 1), jnp.float32)),
        grid_spec=pltpu.PrefetchScalarGridSpec(
            num_scalar_prefetch=0,
            grid=(M_pad // tm_q,),
            in_specs=[pl.BlockSpec((tm_q, K_pad), lambda i: (i, 0))],
            out_specs=[pl.BlockSpec((tm_q, K_pad), lambda i: (i, 0)),
                       pl.BlockSpec((tm_q, 1), lambda i: (i, 0))],
        ),
        compiler_params=pltpu.CompilerParams(
            dimension_semantics=("parallel",),
            vmem_limit_bytes=vmem_limit,
        ),
    )(x2)

    # ---- main: K-tiled int8/bf16 matmul with VMEM accumulator + dequant ----
    acc_dtype = jnp.int32 if use_int8_mxu else jnp.float32
    kernel = functools.partial(_qmatmul_kernel, use_int8_mxu=use_int8_mxu)
    out2 = pl.pallas_call(
        kernel,
        out_shape=jax.ShapeDtypeStruct((M_pad, N_pad), out_dtype),
        grid_spec=pltpu.PrefetchScalarGridSpec(
            num_scalar_prefetch=0,
            grid=(M_pad // tm, N_pad // tn, K_pad // tk),     # K (reduction) last
            in_specs=[
                pl.BlockSpec((tm, tk), lambda i, j, k: (i, k)),        # int8 acts
                pl.BlockSpec((None, tk, tn), lambda i, j, k: (j, k, 0)),  # int8 W
                pl.BlockSpec((tm, 1), lambda i, j, k: (i, 0)),         # act scale
                pl.BlockSpec((1, tn), lambda i, j, k: (0, j)),         # w scale
            ],
            out_specs=pl.BlockSpec((tm, tn), lambda i, j, k: (i, j)),
            scratch_shapes=[pltpu.VMEM((tm, tn), acc_dtype)],
        ),
        compiler_params=pltpu.CompilerParams(
            dimension_semantics=("parallel", "parallel", "arbitrary"),
            vmem_limit_bytes=vmem_limit,
        ),
    )(aq, prep["w_tiles"], a_scale, prep["w_scale"])

    out2 = out2[:M, :N]
    return out2.reshape(*lead, N)


# --------------------------------------------------------------------------
# Pure-JAX reference replicating the torch forward (for sanity check).
# --------------------------------------------------------------------------
def reference_forward(x, w_q, w_scale_f16, clip_ratio):
    mag = jnp.max(jnp.abs(x), axis=-1, keepdims=True) * clip_ratio
    a_scale = jnp.where(mag == 0.0, jnp.ones_like(mag), mag / 127.0)
    a = jnp.round(jnp.clip(x / a_scale, -128.0, 127.0))
    acc = a @ w_q.astype(jnp.float32).T
    return (acc * a_scale * w_scale_f16.astype(jnp.float32).T).astype(x.dtype)


if __name__ == "__main__":
    # Module config (bits=8, quant_dtype=int8, bias=False)
    batch, seq = 2, 8
    in_features, out_features = 128, 256
    clip_ratio = 1.0

    key = jax.random.PRNGKey(0)
    kx, kw = jax.random.split(key)

    # Deterministic "checkpoint": quantize a random fp weight per output row.
    w_fp = jax.random.normal(kw, (out_features, in_features), dtype=jnp.float32) * 0.05
    w_q, w_scale = quantize_sym_int8(w_fp, dim=-1, clip_ratio=clip_ratio)
    w_scale_f16 = w_scale.astype(jnp.float16)       # module stores scale as float16

    # Init-time weight re-layout (done once, cached).
    prep = prepare_qlinear_weights(w_q, w_scale_f16)

    x = jax.random.normal(kx, (batch, seq, in_features), dtype=jnp.float32)

    out = quantized_linear(x, prep, clip_ratio=clip_ratio)
    out = jax.block_until_ready(out)

    ref = reference_forward(x.reshape(-1, in_features), w_q, w_scale_f16, clip_ratio)
    ref = ref.reshape(batch, seq, out_features)

    assert out.shape == (batch, seq, out_features)
    # Tolerance covers 1-LSB differences from multiply-by-inverse activation
    # quantization (kernel) vs. division (reference / torch).
    assert jnp.allclose(out, ref, atol=1e-2, rtol=1e-2), (
        "mismatch vs reference: max abs diff %g"
        % float(jnp.max(jnp.abs(out - ref))))

    print("KERNEL_OK")
</pallas_src>

<mosaic_0001>
module attributes {stable_mosaic.version = 11 : i64} {
  func.func @_act_quant_kernel(%arg0: i32, %arg1: memref<32x128xf32, #tpu.memory_space<vmem>>, %arg2: memref<32x128xi8, #tpu.memory_space<vmem>>, %arg3: memref<32x1xf32, #tpu.memory_space<vmem>>) attributes {dimension_semantics = [#tpu.dimension_semantics<parallel>], iteration_bounds = array<i64: 1>, scalar_prefetch = 0 : i64, scratch_operands = 0 : i64, tpu.core_type = #tpu.core_type<tc>, window_params = [{transform_indices = @transform_0, window_bounds = array<i64: 32, 128>}, {transform_indices = @transform_1, window_bounds = array<i64: 32, 128>}, {transform_indices = @transform_2, window_bounds = array<i64: 32, 1>}]} {
    %c0 = arith.constant 0 : index
    %c0_0 = arith.constant 0 : index
    %0 = vector.load %arg1[%c0, %c0_0] : memref<32x128xf32, #tpu.memory_space<vmem>>, vector<32x128xf32>
    %1 = math.absf %0 : vector<32x128xf32>
    %cst = arith.constant dense<0xFF800000> : vector<32xf32>
    %2 = vector.multi_reduction <maximumf>, %1, %cst [1] : vector<32x128xf32> to vector<32xf32>
    %3 = vector.shape_cast %2 : vector<32xf32> to vector<32x1xf32>
    %cst_1 = arith.constant 1.000000e+00 : f32
    %4 = vector.broadcast %cst_1 : f32 to vector<32x1xf32>
    %5 = arith.mulf %3, %4 : vector<32x1xf32>
    %cst_2 = arith.constant 0.000000e+00 : f32
    %6 = vector.broadcast %cst_2 : f32 to vector<32x1xf32>
    %7 = arith.cmpf oeq, %5, %6 : vector<32x1xf32>
    %cst_3 = arith.constant 0.00787401571 : f32
    %8 = vector.broadcast %cst_3 : f32 to vector<32x1xf32>
    %9 = arith.mulf %5, %8 : vector<32x1xf32>
    %cst_4 = arith.constant 1.000000e+00 : f32
    %10 = vector.broadcast %cst_4 : f32 to vector<32x1xf32>
    %11 = arith.select %7, %10, %9 : vector<32x1xi1>, vector<32x1xf32>
    %c0_5 = arith.constant 0 : index
    %c0_6 = arith.constant 0 : index
    %12 = vector.load %arg3[%c0_5, %c0_6] : memref<32x1xf32, #tpu.memory_space<vmem>>, vector<32x1xf32>
    tpu.vector_store %arg3[%c0_5, %c0_6], %11 {strides = array<i32>} : memref<32x1xf32, #tpu.memory_space<vmem>>, vector<32x1xf32>,
    %cst_7 = arith.constant 1.270000e+02 : f32
    %13 = vector.broadcast %cst_7 : f32 to vector<32x1xf32>
    %14 = arith.divf %13, %5 : vector<32x1xf32>
    %cst_8 = arith.constant 1.000000e+00 : f32
    %15 = vector.broadcast %cst_8 : f32 to vector<32x1xf32>
    %16 = arith.select %7, %15, %14 : vector<32x1xi1>, vector<32x1xf32>
    %17 = vector.broadcast %16 : vector<32x1xf32> to vector<32x128xf32>
    %18 = arith.mulf %0, %17 : vector<32x128xf32>
    %cst_9 = arith.constant -1.280000e+02 : f32
    %cst_10 = arith.constant 1.270000e+02 : f32
    %19 = vector.broadcast %cst_9 : f32 to vector<32x128xf32>
    %20 = arith.maximumf %19, %18 : vector<32x128xf32>
    %21 = vector.broadcast %cst_10 : f32 to vector<32x128xf32>
    %22 = arith.minimumf %21, %20 : vector<32x128xf32>
    %23 = math.roundeven %22 : vector<32x128xf32>
    %24 = arith.fptosi %23 : vector<32x128xf32> to vector<32x128xi8>
    %c0_11 = arith.constant 0 : index
    %c0_12 = arith.constant 0 : index
    %25 = vector.load %arg2[%c0_11, %c0_12] : memref<32x128xi8, #tpu.memory_space<vmem>>, vector<32x128xi8>
    tpu.vector_store %arg2[%c0_11, %c0_12], %24 {strides = array<i32>} : memref<32x128xi8, #tpu.memory_space<vmem>>, vector<32x128xi8>,
    return
  }
  func.func @transform_0(%arg0: i32) -> (i32, i32) {
    %c0_i32 = arith.constant 0 : i32
    %c0_i32_0 = arith.constant 0 : i32
    return %arg0, %c0_i32 : i32, i32
  }
  func.func @transform_1(%arg0: i32) -> (i32, i32) {
    %c0_i32 = arith.constant 0 : i32
    %c0_i32_0 = arith.constant 0 : i32
    return %arg0, %c0_i32 : i32, i32
  }
  func.func @transform_2(%arg0: i32) -> (i32, i32) {
    %c0_i32 = arith.constant 0 : i32
    %c0_i32_0 = arith.constant 0 : i32
    return %arg0, %c0_i32 : i32, i32
  }
}

</mosaic_0001>

<llo_original>
// kernel: tpu_custom_call.1
$region0: #{tpu_custom_call.1}
  #allocation0 [shape = 'u32[]', space=smem, size = 0x4, offset = 0x4, fixed_abs, tag = 'smem constant byte address 0x4 - core index']
  #allocation1 [shape = 'u32[144,128]{1,0:T(1,128)}', space=vmem, size = 0x12000, scoped, tag = 'internal scratch']
  %s0 = inlined_call_operand.hbm [shape: f32[32,128], index: 0, kind: input, shape index: {}]
  %s1 = inlined_call_operand.hbm [shape: s8[32,128], index: 1, kind: output, shape index: {0}]
  %s2 = inlined_call_operand.vmem [shape: f32[32,1], index: 2, kind: output, shape index: {1}]
  %3 = xla_tuple %s1, %s2
  %s4 = sld [smem:[#allocation0]]
  $region26: #{tpu_custom_call.1} parent=0
    _
  %s6 = ssub.s32 1, %s4
  %s7 = scalar_select 0, %s6, %s4
  $region1: #{tpu_custom_call.1} parent=0
    #allocation2 [shape = 'u8[16384]{0}', space=vmem, size = 0x4000, scoped, tag = 'input window, operand 0, single buffered']
    #allocation3 [shape = 's32[1]{0}', space=sflag, size = 0x4, scoped, tag = 'scoped memory for tpu_custom_call.1']
    #allocation4 [shape = 's32[1]{0}', space=sflag, size = 0x4, scoped, tag = 'scoped memory for tpu_custom_call.1']
    #allocation5 [shape = 'u8[4096]{0}', space=vmem, size = 0x1000, scoped, tag = 'output window, operand 0, single buffered']
    %8 = vsyncpa [#allocation3], 0
    %9 = vsyncpa [#allocation4], 0
    // Predicated region
    $region2: #{tpu_custom_call.1} parent=1 // pred_check
      _
    $region3: #{tpu_custom_call.1} parent=1 // pred_check_branch
      %11 = sbr.rel (0) target = $region5
    $region4: #{tpu_custom_call.1} parent=1 // pred_region
      %s13 = ssub.s32 512, 512
      %14 = vsyncadd [#allocation3], %s13
      %s15 = sshll.u32 [#allocation2], 4
      %s16 = int_to_ptr.vmem [resolvable:$true] %s15
      %21 = dma.hbm_to_vmem [thread:$0]  %s0, 512, %s16, [#allocation3], 128, 128, 8
    $region5: #{tpu_custom_call.1} parent=1 // pred_fallthru
      _
    // Predicated region
    $region6: #{tpu_custom_call.1} parent=1 // pred_check
      _
    $region7: #{tpu_custom_call.1} parent=1 // pred_check_branch
      %23 = sbr.rel (0) target = $region9
    $region8: #{tpu_custom_call.1} parent=1 // pred_region
      %24 = dma.done [#allocation3], 512
    $region9: #{tpu_custom_call.1} parent=1 // pred_fallthru
      _
    %v25 = vld [vmem:[#allocation2] sm:$0xff]
    %v26 = vld [vmem:[#allocation2 + $0x8] sm:$0xff]
    %v27 = vld [vmem:[#allocation2 + $0x10] sm:$0xff]
    %v28 = vld [vmem:[#allocation2 + $0x18] sm:$0xff]
    %v29 = vand.u32 2147483647, %v25
    %v30 = vand.u32 2147483647, %v26
    %v31 = vand.u32 2147483647, %v27
    %v32 = vand.u32 2147483647, %v28
    %33 = vmax.xlane.f32.xlu0 %v29
    %v34 = vpop.xlane.xlu0 %33
    %35 = vmax.xlane.f32.xlu0 %v30
    %v36 = vpop.xlane.xlu0 %35
    %37 = vmax.xlane.f32.xlu0 %v31
    %v38 = vpop.xlane.xlu0 %37
    %39 = vmax.xlane.f32.xlu0 %v32
    %v40 = vpop.xlane.xlu0 %39
    %vm41 = vcmp.eq.f32.partialorder %v34, 0.0
    %vm42 = vcmp.eq.f32.partialorder %v36, 0.0
    %vm43 = vcmp.eq.f32.partialorder %v38, 0.0
    %vm44 = vcmp.eq.f32.partialorder %v40, 0.0
    %v45 = vmul.f32 %v34, 0.007874016
    %v46 = vmul.f32 %v36, 0.007874016
    %v47 = vmul.f32 %v38, 0.007874016
    %v48 = vmul.f32 %v40, 0.007874016
    %v49 = vsel %vm41, 1.0, %v45
    %v50 = vsel %vm42, 1.0, %v46
    %v51 = vsel %vm43, 1.0, %v47
    %v52 = vsel %vm44, 1.0, %v48
    %vm53 = vcmask 7168
    %54 = vst.msk [vmem:[%s2] sm:$0xff] %vm53, %v49
    %55 = vst.msk [vmem:[%s2 + $0x8] sm:$0xff] %vm53, %v50
    %56 = vst.msk [vmem:[%s2 + $0x10] sm:$0xff] %vm53, %v51
    %57 = vst.msk [vmem:[%s2 + $0x18] sm:$0xff] %vm53, %v52
    %v58 = vrcp.pop %v34
    %v59 = vmul.f32 127.0, %v58
    %v60 = vrcp.pop %v36
    %v61 = vmul.f32 127.0, %v60
    %v62 = vrcp.pop %v38
    %v63 = vmul.f32 127.0, %v62
    %v64 = vrcp.pop %v40
    %v65 = vmul.f32 127.0, %v64
    %v66 = vsel %vm41, 1.0, %v59
    %v67 = vsel %vm42, 1.0, %v61
    %v68 = vsel %vm43, 1.0, %v63
    %v69 = vsel %vm44, 1.0, %v65
    %v70 = vmul.f32 %v25, %v66
    %v71 = vmul.f32 %v26, %v67
    %v72 = vmul.f32 %v27, %v68
    %v73 = vmul.f32 %v28, %v69
    %v74 = vmax.f32 %v70, -128.0
    %v75 = vmax.f32 %v71, -128.0
    %v76 = vmax.f32 %v72, -128.0
    %v77 = vmax.f32 %v73, -128.0
    %v78 = vmin.f32 %v74, 127.0
    %v79 = vmin.f32 %v75, 127.0
    %v80 = vmin.f32 %v76, 127.0
    %v81 = vmin.f32 %v77, 127.0
    %v82 = vpack.c.f32.eXmY %v78, %v79, 312
    %v86 = vpack.c.f32.eXmY %v80, %v81, 312
    %v90 = vpack.c.b8 %v86, %v82
    %92 = vst [vmem:[#allocation5] sm:$0xff] %v90
    // Predicated region
    $region10: #{tpu_custom_call.1} parent=1 // pred_check
      _
    $region11: #{tpu_custom_call.1} parent=1 // pred_check_branch
      %94 = sbr.rel (0) target = $region13
    $region12: #{tpu_custom_call.1} parent=1 // pred_region
      %s96 = ssub.s32 128, 128
      %97 = vsyncadd [#allocation4], %s96
      %s99 = sshll.u32 [#allocation5], 4
      %s100 = int_to_ptr.vmem [resolvable:$true] %s99
      %102 = dma.vmem_to_hbm [thread:$0]  %s100, 128, %s1, [#allocation4]
    $region13: #{tpu_custom_call.1} parent=1 // pred_fallthru
      _
    // Predicated region
    $region14: #{tpu_custom_call.1} parent=1 // pred_check
      _
    $region15: #{tpu_custom_call.1} parent=1 // pred_check_branch
      %104 = sbr.rel (0) target = $region17
    $region16: #{tpu_custom_call.1} parent=1 // pred_region
      _
    $region17: #{tpu_custom_call.1} parent=1 // pred_fallthru
      _
    // Predicated region
    $region18: #{tpu_custom_call.1} parent=1 // pred_check
      _
    $region19: #{tpu_custom_call.1} parent=1 // pred_check_branch
      %106 = sbr.rel (0) target = $region21
    $region20: #{tpu_custom_call.1} parent=1 // pred_region
      %107 = dma.done [#allocation4], 128
    $region21: #{tpu_custom_call.1} parent=1 // pred_fallthru
      _
    // Predicated region
    $region22: #{tpu_custom_call.1} parent=1 // pred_check
      _
    $region23: #{tpu_custom_call.1} parent=1 // pred_check_branch
      %109 = sbr.rel (0) target = $region25
    $region24: #{tpu_custom_call.1} parent=1 // pred_region
      _
    $region25: #{tpu_custom_call.1} parent=1 // pred_fallthru
      _
    %110 = vsyncpa [#allocation3], 1
    %111 = vsyncpa [#allocation4], 1

</llo_original>
